<compile_context>
chip_gen: v5e
topology: v5e:2x2
jax: 0.10.0
libtpu: 0.0.40
codegen_flags: <defaults>
</compile_context>

<pallas_src>
import math

import jax
import jax.numpy as jnp
from jax.experimental import pallas as pl
from jax.experimental.pallas import tpu as pltpu

N_IN = 2
N_HID = 3
N_OUT = 1

LANE = 128     # rows packed onto the lane axis
TR_MAX = 512   # max sublanes (row-groups of 128) per grid step


def _round_up(x, m):
    return ((x + m - 1) // m) * m


def _mlp_kernel(x_ref, w1_ref, b1_ref, w2_ref, b2_ref, o_ref):
    """Pointwise 2->3->1 MLP on a lane-dense slab of rows.

    x_ref : (N_IN, TR, LANE) VMEM  channel-major packed rows
    w1_ref: (N_IN, N_HID)    SMEM  hidden weights (in, hid)
    b1_ref: (N_HID,)         SMEM  hidden bias
    w2_ref: (N_HID,)         SMEM  output weights (n_out == 1)
    b2_ref: (N_OUT,)         SMEM  output bias
    o_ref : (TR, LANE)       VMEM  lane-dense output plane
    """
    x0 = x_ref[0]
    x1 = x_ref[1]
    acc = jnp.full(o_ref.shape, b2_ref[0], dtype=jnp.float32)
    for j in range(N_HID):                       # 9 FMAs/row, all on the VPU
        h = x0 * w1_ref[0, j] + x1 * w1_ref[1, j] + b1_ref[j]
        h = jnp.maximum(h, 0.0)                  # ReLU
        acc = acc + h * w2_ref[j]
    o_ref[...] = acc


def spatial_temporal_pnn_pallas(x, w1, b1, w2, b2):
    """x: (..., N_IN) float32 -> (..., N_OUT) float32."""
    lead_shape = x.shape[:-1]
    rows = int(math.prod(lead_shape)) if lead_shape else 1
    x2 = x.reshape(rows, N_IN).astype(jnp.float32)

    # Row-group / tile geometry (all static Python ints).
    r_total = -(-rows // LANE)                       # number of 128-row groups
    tr = min(TR_MAX, _round_up(max(-(-r_total // 2), 1), 8))  # >=2 blocks when big
    r_pad = _round_up(r_total, tr)
    rows_pad = r_pad * LANE
    grid = (r_pad // tr,)

    # Channel-major, lane-dense packing: (rows, 2) -> (2, r_pad, 128).
    x_cm = x2.T                                      # (2, rows): 2 f32/row moved
    x_cm = jnp.pad(x_cm, ((0, 0), (0, rows_pad - rows)))
    x_cm = x_cm.reshape(N_IN, r_pad, LANE)

    # Tiny parameters as SMEM scalars (no padding, no weight slabs).
    w1_s = w1.astype(jnp.float32).reshape(N_IN, N_HID)
    b1_s = b1.astype(jnp.float32).reshape(N_HID)
    w2_s = w2.astype(jnp.float32).reshape(N_HID)     # (3,1) -> (3,) since n_out=1
    b2_s = b2.astype(jnp.float32).reshape(N_OUT)

    smem_spec = pl.BlockSpec(memory_space=pltpu.MemorySpace.SMEM)

    out_plane = pl.pallas_call(
        _mlp_kernel,
        out_shape=jax.ShapeDtypeStruct((r_pad, LANE), jnp.float32),
        grid_spec=pltpu.PrefetchScalarGridSpec(
            num_scalar_prefetch=0,
            grid=grid,
            in_specs=[
                pl.BlockSpec((N_IN, tr, LANE), lambda i: (0, i, 0)),  # x planes
                smem_spec,   # w1
                smem_spec,   # b1
                smem_spec,   # w2
                smem_spec,   # b2
            ],
            out_specs=pl.BlockSpec((tr, LANE), lambda i: (i, 0)),
        ),
        compiler_params=pltpu.CompilerParams(
            dimension_semantics=("parallel",)),
    )(x_cm, w1_s, b1_s, w2_s, b2_s)

    out = out_plane.reshape(rows_pad)[:rows]         # drop row padding only
    return out.reshape(*lead_shape, N_OUT)


def init_params(key):
    """Deterministic parameter init mimicking the PyTorch module.

    hidden.weight / out.weight: xavier_normal_ (as in init_weight()).
    biases: PyTorch nn.Linear default uniform(-1/sqrt(fan_in), 1/sqrt(fan_in)).
    Weights stored transposed to (in, out) so y = x @ W + b.
    """
    k1, k2, k3, k4 = jax.random.split(key, 4)
    std1 = math.sqrt(2.0 / (N_IN + N_HID))
    std2 = math.sqrt(2.0 / (N_HID + N_OUT))
    w1 = std1 * jax.random.normal(k1, (N_IN, N_HID), jnp.float32)
    w2 = std2 * jax.random.normal(k2, (N_HID, N_OUT), jnp.float32)
    bnd1 = 1.0 / math.sqrt(N_IN)
    bnd2 = 1.0 / math.sqrt(N_HID)
    b1 = jax.random.uniform(k3, (N_HID,), jnp.float32, -bnd1, bnd1)
    b2 = jax.random.uniform(k4, (N_OUT,), jnp.float32, -bnd2, bnd2)
    return w1, b1, w2, b2


def reference_mlp(x, w1, b1, w2, b2):
    h = jnp.maximum(jnp.dot(x, w1) + b1, 0.0)
    return jnp.dot(h, w2) + b2


if __name__ == "__main__":
    key = jax.random.PRNGKey(0)
    k_x, k_p = jax.random.split(key)

    # Small "spatial-temporal" input: (batch=2, seq=8, spatial=16, n_in=2)
    x = jax.random.normal(k_x, (2, 8, 16, N_IN), jnp.float32)
    w1, b1, w2, b2 = init_params(k_p)

    y = spatial_temporal_pnn_pallas(x, w1, b1, w2, b2)
    y = jax.block_until_ready(y)

    # Correctness check against plain-JAX reference of the PyTorch forward.
    y_ref = reference_mlp(x, w1, b1, w2, b2)
    assert y.shape == (2, 8, 16, N_OUT), y.shape
    assert jnp.allclose(y, y_ref, atol=1e-5, rtol=1e-5), "mismatch vs reference"

    print("KERNEL_OK")
</pallas_src>

<mosaic_0001>
module attributes {stable_mosaic.version = 11 : i64} {
  func.func @_mlp_kernel(%arg0: i32, %arg1: memref<2x8x128xf32, #tpu.memory_space<vmem>>, %arg2: memref<2x3xf32, #tpu.memory_space<smem>>, %arg3: memref<3xf32, #tpu.memory_space<smem>>, %arg4: memref<3xf32, #tpu.memory_space<smem>>, %arg5: memref<1xf32, #tpu.memory_space<smem>>, %arg6: memref<8x128xf32, #tpu.memory_space<vmem>>) attributes {dimension_semantics = [#tpu.dimension_semantics<parallel>], iteration_bounds = array<i64: 1>, scalar_prefetch = 0 : i64, scratch_operands = 0 : i64, tpu.core_type = #tpu.core_type<tc>, window_params = [{transform_indices = @transform_0, window_bounds = array<i64: 2, 8, 128>}, {transform_indices = @transform_1, window_bounds = array<i64: 2, 3>}, {transform_indices = @transform_2, window_bounds = array<i64: 3>}, {transform_indices = @transform_3, window_bounds = array<i64: 3>}, {transform_indices = @transform_4, window_bounds = array<i64: 1>}, {transform_indices = @transform_5, window_bounds = array<i64: 8, 128>}]} {
    %c0 = arith.constant 0 : index
    %c0_0 = arith.constant 0 : index
    %c0_1 = arith.constant 0 : index
    %0 = vector.load %arg1[%c0, %c0_0, %c0_1] : memref<2x8x128xf32, #tpu.memory_space<vmem>>, vector<1x8x128xf32>
    %1 = vector.shape_cast %0 : vector<1x8x128xf32> to vector<8x128xf32>
    %c1 = arith.constant 1 : index
    %c0_2 = arith.constant 0 : index
    %c0_3 = arith.constant 0 : index
    %2 = vector.load %arg1[%c1, %c0_2, %c0_3] : memref<2x8x128xf32, #tpu.memory_space<vmem>>, vector<1x8x128xf32>
    %3 = vector.shape_cast %2 : vector<1x8x128xf32> to vector<8x128xf32>
    %c0_4 = arith.constant 0 : index
    %4 = memref.load %arg5[%c0_4] : memref<1xf32, #tpu.memory_space<smem>>
    %5 = vector.broadcast %4 : f32 to vector<8x128xf32>
    %c0_5 = arith.constant 0 : index
    %c0_6 = arith.constant 0 : index
    %6 = memref.load %arg2[%c0_5, %c0_6] : memref<2x3xf32, #tpu.memory_space<smem>>
    %7 = vector.broadcast %6 : f32 to vector<8x128xf32>
    %8 = arith.mulf %1, %7 : vector<8x128xf32>
    %c1_7 = arith.constant 1 : index
    %c0_8 = arith.constant 0 : index
    %9 = memref.load %arg2[%c1_7, %c0_8] : memref<2x3xf32, #tpu.memory_space<smem>>
    %10 = vector.broadcast %9 : f32 to vector<8x128xf32>
    %11 = arith.mulf %3, %10 : vector<8x128xf32>
    %12 = arith.addf %8, %11 : vector<8x128xf32>
    %c0_9 = arith.constant 0 : index
    %13 = memref.load %arg3[%c0_9] : memref<3xf32, #tpu.memory_space<smem>>
    %14 = vector.broadcast %13 : f32 to vector<8x128xf32>
    %15 = arith.addf %12, %14 : vector<8x128xf32>
    %cst = arith.constant 0.000000e+00 : f32
    %16 = vector.broadcast %cst : f32 to vector<8x128xf32>
    %17 = arith.maximumf %15, %16 : vector<8x128xf32>
    %c0_10 = arith.constant 0 : index
    %18 = memref.load %arg4[%c0_10] : memref<3xf32, #tpu.memory_space<smem>>
    %19 = vector.broadcast %18 : f32 to vector<8x128xf32>
    %20 = arith.mulf %17, %19 : vector<8x128xf32>
    %21 = arith.addf %5, %20 : vector<8x128xf32>
    %c0_11 = arith.constant 0 : index
    %c1_12 = arith.constant 1 : index
    %22 = memref.load %arg2[%c0_11, %c1_12] : memref<2x3xf32, #tpu.memory_space<smem>>
    %23 = vector.broadcast %22 : f32 to vector<8x128xf32>
    %24 = arith.mulf %1, %23 : vector<8x128xf32>
    %c1_13 = arith.constant 1 : index
    %c1_14 = arith.constant 1 : index
    %25 = memref.load %arg2[%c1_13, %c1_14] : memref<2x3xf32, #tpu.memory_space<smem>>
    %26 = vector.broadcast %25 : f32 to vector<8x128xf32>
    %27 = arith.mulf %3, %26 : vector<8x128xf32>
    %28 = arith.addf %24, %27 : vector<8x128xf32>
    %c1_15 = arith.constant 1 : index
    %29 = memref.load %arg3[%c1_15] : memref<3xf32, #tpu.memory_space<smem>>
    %30 = vector.broadcast %29 : f32 to vector<8x128xf32>
    %31 = arith.addf %28, %30 : vector<8x128xf32>
    %cst_16 = arith.constant 0.000000e+00 : f32
    %32 = vector.broadcast %cst_16 : f32 to vector<8x128xf32>
    %33 = arith.maximumf %31, %32 : vector<8x128xf32>
    %c1_17 = arith.constant 1 : index
    %34 = memref.load %arg4[%c1_17] : memref<3xf32, #tpu.memory_space<smem>>
    %35 = vector.broadcast %34 : f32 to vector<8x128xf32>
    %36 = arith.mulf %33, %35 : vector<8x128xf32>
    %37 = arith.addf %21, %36 : vector<8x128xf32>
    %c0_18 = arith.constant 0 : index
    %c2 = arith.constant 2 : index
    %38 = memref.load %arg2[%c0_18, %c2] : memref<2x3xf32, #tpu.memory_space<smem>>
    %39 = vector.broadcast %38 : f32 to vector<8x128xf32>
    %40 = arith.mulf %1, %39 : vector<8x128xf32>
    %c1_19 = arith.constant 1 : index
    %c2_20 = arith.constant 2 : index
    %41 = memref.load %arg2[%c1_19, %c2_20] : memref<2x3xf32, #tpu.memory_space<smem>>
    %42 = vector.broadcast %41 : f32 to vector<8x128xf32>
    %43 = arith.mulf %3, %42 : vector<8x128xf32>
    %44 = arith.addf %40, %43 : vector<8x128xf32>
    %c2_21 = arith.constant 2 : index
    %45 = memref.load %arg3[%c2_21] : memref<3xf32, #tpu.memory_space<smem>>
    %46 = vector.broadcast %45 : f32 to vector<8x128xf32>
    %47 = arith.addf %44, %46 : vector<8x128xf32>
    %cst_22 = arith.constant 0.000000e+00 : f32
    %48 = vector.broadcast %cst_22 : f32 to vector<8x128xf32>
    %49 = arith.maximumf %47, %48 : vector<8x128xf32>
    %c2_23 = arith.constant 2 : index
    %50 = memref.load %arg4[%c2_23] : memref<3xf32, #tpu.memory_space<smem>>
    %51 = vector.broadcast %50 : f32 to vector<8x128xf32>
    %52 = arith.mulf %49, %51 : vector<8x128xf32>
    %53 = arith.addf %37, %52 : vector<8x128xf32>
    %c0_24 = arith.constant 0 : index
    %c0_25 = arith.constant 0 : index
    %54 = vector.load %arg6[%c0_24, %c0_25] : memref<8x128xf32, #tpu.memory_space<vmem>>, vector<8x128xf32>
    tpu.vector_store %arg6[%c0_24, %c0_25], %53 {strides = array<i32>} : memref<8x128xf32, #tpu.memory_space<vmem>>, vector<8x128xf32>,
    return
  }
  func.func @transform_0(%arg0: i32) -> (i32, i32, i32) {
    %c0_i32 = arith.constant 0 : i32
    %c0_i32_0 = arith.constant 0 : i32
    %c0_i32_1 = arith.constant 0 : i32
    return %c0_i32, %arg0, %c0_i32_0 : i32, i32, i32
  }
  func.func @transform_1(%arg0: i32) -> (i32, i32) {
    %c0_i32 = arith.constant 0 : i32
    %c0_i32_0 = arith.constant 0 : i32
    %c0_i32_1 = arith.constant 0 : i32
    return %c0_i32, %c0_i32_0 : i32, i32
  }
  func.func @transform_2(%arg0: i32) -> i32 {
    %c0_i32 = arith.constant 0 : i32
    %c0_i32_0 = arith.constant 0 : i32
    return %c0_i32 : i32
  }
  func.func @transform_3(%arg0: i32) -> i32 {
    %c0_i32 = arith.constant 0 : i32
    %c0_i32_0 = arith.constant 0 : i32
    return %c0_i32 : i32
  }
  func.func @transform_4(%arg0: i32) -> i32 {
    %c0_i32 = arith.constant 0 : i32
    %c0_i32_0 = arith.constant 0 : i32
    return %c0_i32 : i32
  }
  func.func @transform_5(%arg0: i32) -> (i32, i32) {
    %c0_i32 = arith.constant 0 : i32
    %c0_i32_0 = arith.constant 0 : i32
    return %arg0, %c0_i32 : i32, i32
  }
}

</mosaic_0001>

<llo_original>
// kernel: tpu_custom_call.1
$region0: #{tpu_custom_call.1}
  #allocation0 [shape = 'u32[]', space=smem, size = 0x4, offset = 0x4, fixed_abs, tag = 'smem constant byte address 0x4 - core index']
  #allocation1 [shape = 'u32[72,128]{1,0:T(1,128)}', space=vmem, size = 0x9000, scoped, tag = 'internal scratch']
  #allocation2 [shape = 'f32[1]{0:T(128)S(6)}', space=smem, size = 0x200, scoped, tag = 'scoped memory for tpu_custom_call.1']
  %s0 = inlined_call_operand.hbm [shape: f32[2,8,128], index: 0, kind: input, shape index: {}]
  %s1 = inlined_call_operand.vmem [shape: f32[2,3], index: 1, kind: input, shape index: {}]
  %s2 = inlined_call_operand.vmem [shape: f32[3], index: 2, kind: input, shape index: {}]
  %s3 = inlined_call_operand.vmem [shape: f32[3], index: 3, kind: input, shape index: {}]
  %s4 = inlined_call_operand.<no memory space> [shape: f32[1], index: 4, kind: input, shape index: {}]
  %s5 = inlined_call_operand.hbm [shape: f32[8,128], index: 5, kind: output, shape index: {}]
  %s6 = sld [smem:[#allocation0]]
  $region46: #{tpu_custom_call.1} parent=0
    _
  %s8 = ssub.s32 1, %s6
  %s9 = scalar_select 0, %s8, %s6
  %10 = sst [smem:[#allocation2]] %s4
  $region1: #{tpu_custom_call.1} parent=0
    #allocation3 [shape = 'u8[8192]{0}', space=vmem, size = 0x2000, scoped, tag = 'input window, operand 0, single buffered']
    #allocation4 [shape = 's32[1]{0}', space=sflag, size = 0x4, scoped, tag = 'scoped memory for tpu_custom_call.1']
    #allocation5 [shape = 's32[1]{0}', space=sflag, size = 0x4, scoped, tag = 'scoped memory for tpu_custom_call.1']
    #allocation6 [shape = 's32[1]{0}', space=sflag, size = 0x4, scoped, tag = 'scoped memory for tpu_custom_call.1']
    #allocation7 [shape = 'u8[1024]{0}', space=smem, size = 0x400, scoped, tag = 'input window, operand 1, single buffered']
    #allocation8 [shape = 'u8[512]{0}', space=smem, size = 0x200, scoped, tag = 'input window, operand 2, single buffered']
    #allocation9 [shape = 's32[1]{0}', space=sflag, size = 0x4, scoped, tag = 'scoped memory for tpu_custom_call.1']
    #allocation10 [shape = 'u8[512]{0}', space=smem, size = 0x200, scoped, tag = 'input window, operand 3, single buffered']
    #allocation11 [shape = 'u8[4096]{0}', space=vmem, size = 0x1000, scoped, tag = 'output window, operand 0, single buffered']
    %11 = vsyncpa [#allocation4], 0
    %12 = vsyncpa [#allocation6], 0
    %13 = vsyncpa [#allocation9], 0
    %14 = vsyncpa [#allocation5], 0
    // Predicated region
    $region2: #{tpu_custom_call.1} parent=1 // pred_check
      _
    $region3: #{tpu_custom_call.1} parent=1 // pred_check_branch
      %16 = sbr.rel (0) target = $region5
    $region4: #{tpu_custom_call.1} parent=1 // pred_region
      %18 = vsyncadd [#allocation4], 0
      %s19 = sshll.u32 %s0, 4
      %s20 = int_to_ptr.hbm [resolvable:$true] %s19
      %s21 = sshll.u32 [#allocation3], 4
      %s22 = int_to_ptr.vmem [resolvable:$true] %s21
      %27 = dma.hbm_to_vmem [thread:$0]  %s20, 256, %s22, [#allocation4], 128, 128, 8
    $region5: #{tpu_custom_call.1} parent=1 // pred_fallthru
      _
    // Predicated region
    $region6: #{tpu_custom_call.1} parent=1 // pred_check
      _
    $region7: #{tpu_custom_call.1} parent=1 // pred_check_branch
      %29 = sbr.rel (0) target = $region9
    $region8: #{tpu_custom_call.1} parent=1 // pred_region
      %31 = vsyncadd [#allocation6], 0
      %s33 = sshll.u32 %s1, 4
      %s34 = int_to_ptr.vmem [resolvable:$true] %s33
      %36 = dma.vmem_to_smem %s34, 32, [#allocation7], [#allocation6]
    $region9: #{tpu_custom_call.1} parent=1 // pred_fallthru
      _
    // Predicated region
    $region10: #{tpu_custom_call.1} parent=1 // pred_check
      _
    $region11: #{tpu_custom_call.1} parent=1 // pred_check_branch
      %38 = sbr.rel (0) target = $region13
    $region12: #{tpu_custom_call.1} parent=1 // pred_region
      %40 = vsyncadd [#allocation9], 0
      %s42 = sshll.u32 %s2, 4
      %s43 = int_to_ptr.vmem [resolvable:$true] %s42
      %45 = dma.vmem_to_smem %s43, 16, [#allocation8], [#allocation9]
    $region13: #{tpu_custom_call.1} parent=1 // pred_fallthru
      _
    // Predicated region
    $region14: #{tpu_custom_call.1} parent=1 // pred_check
      _
    $region15: #{tpu_custom_call.1} parent=1 // pred_check_branch
      %47 = sbr.rel (0) target = $region17
    $region16: #{tpu_custom_call.1} parent=1 // pred_region
      %49 = vsyncadd [#allocation9], 0
      %s51 = sshll.u32 %s3, 4
      %s52 = int_to_ptr.vmem [resolvable:$true] %s51
      %54 = dma.vmem_to_smem %s52, 16, [#allocation10], [#allocation9]
    $region17: #{tpu_custom_call.1} parent=1 // pred_fallthru
      _
    // Predicated region
    $region18: #{tpu_custom_call.1} parent=1 // pred_check
      _
    $region19: #{tpu_custom_call.1} parent=1 // pred_check_branch
      %56 = sbr.rel (0) target = $region21
    $region20: #{tpu_custom_call.1} parent=1 // pred_region
      _
    $region21: #{tpu_custom_call.1} parent=1 // pred_fallthru
      _
    // Predicated region
    $region22: #{tpu_custom_call.1} parent=1 // pred_check
      _
    $region23: #{tpu_custom_call.1} parent=1 // pred_check_branch
      %58 = sbr.rel (0) target = $region25
    $region24: #{tpu_custom_call.1} parent=1 // pred_region
      %60 = dma.done [#allocation4], 256
    $region25: #{tpu_custom_call.1} parent=1 // pred_fallthru
      _
    // Predicated region
    $region26: #{tpu_custom_call.1} parent=1 // pred_check
      _
    $region27: #{tpu_custom_call.1} parent=1 // pred_check_branch
      %62 = sbr.rel (0) target = $region29
    $region28: #{tpu_custom_call.1} parent=1 // pred_region
      %64 = dma.done [#allocation6], 32
    $region29: #{tpu_custom_call.1} parent=1 // pred_fallthru
      _
    // Predicated region
    $region30: #{tpu_custom_call.1} parent=1 // pred_check
      _
    $region31: #{tpu_custom_call.1} parent=1 // pred_check_branch
      %66 = sbr.rel (0) target = $region33
    $region32: #{tpu_custom_call.1} parent=1 // pred_region
      %68 = dma.done [#allocation9], 16
    $region33: #{tpu_custom_call.1} parent=1 // pred_fallthru
      _
    // Predicated region
    $region34: #{tpu_custom_call.1} parent=1 // pred_check
      _
    $region35: #{tpu_custom_call.1} parent=1 // pred_check_branch
      %70 = sbr.rel (0) target = $region37
    $region36: #{tpu_custom_call.1} parent=1 // pred_region
      %72 = dma.done [#allocation9], 16
    $region37: #{tpu_custom_call.1} parent=1 // pred_fallthru
      _
    %73 = sfence
    %v74 = vld [vmem:[#allocation3] sm:$0xff]
    %s75 = scalar_lea.vmem [#allocation3], 8
    %v76 = vld [vmem:[%s75] sm:$0xff]
    %s77 = sld [smem:[#allocation2]]
    %v78 = vstv %s77
    %s79 = sld [smem:[#allocation7]]
    %v80 = vstv %s79
    %v81 = vmul.f32 %v74, %v80
    %s82 = sld [smem:[#allocation7 + $0x80]]
    %v83 = vstv %s82
    %v84 = vmul.f32 %v76, %v83
    %v85 = vadd.f32 %v81, %v84
    %s86 = sld [smem:[#allocation8]]
    %v87 = vstv %s86
    %v88 = vadd.f32 %v85, %v87
    %v89 = vmax.f32 %v88, 0.0
    %s90 = sld [smem:[#allocation10]]
    %v91 = vstv %s90
    %v92 = vmul.f32 %v89, %v91
    %v93 = vadd.f32 %v78, %v92
    %s94 = sld [smem:[#allocation7 + $0x1]]
    %v95 = vstv %s94
    %v96 = vmul.f32 %v74, %v95
    %s97 = sld [smem:[#allocation7 + $0x81]]
    %v98 = vstv %s97
    %v99 = vmul.f32 %v76, %v98
    %v100 = vadd.f32 %v96, %v99
    %s101 = sld [smem:[#allocation8 + $0x1]]
    %v102 = vstv %s101
    %v103 = vadd.f32 %v100, %v102
    %v104 = vmax.f32 %v103, 0.0
    %s105 = sld [smem:[#allocation10 + $0x1]]
    %v106 = vstv %s105
    %v107 = vmul.f32 %v104, %v106
    %v108 = vadd.f32 %v93, %v107
    %s109 = sld [smem:[#allocation7 + $0x2]]
    %v110 = vstv %s109
    %v111 = vmul.f32 %v74, %v110
    %s112 = sld [smem:[#allocation7 + $0x82]]
    %v113 = vstv %s112
    %v114 = vmul.f32 %v76, %v113
    %v115 = vadd.f32 %v111, %v114
    %s116 = sld [smem:[#allocation8 + $0x2]]
    %v117 = vstv %s116
    %v118 = vadd.f32 %v115, %v117
    %v119 = vmax.f32 %v118, 0.0
    %s120 = sld [smem:[#allocation10 + $0x2]]
    %v121 = vstv %s120
    %v122 = vmul.f32 %v119, %v121
    %v123 = vadd.f32 %v108, %v122
    %124 = vst [vmem:[#allocation11] sm:$0xff] %v123
    // Predicated region
    $region38: #{tpu_custom_call.1} parent=1 // pred_check
      _
    $region39: #{tpu_custom_call.1} parent=1 // pred_check_branch
      %126 = sbr.rel (0) target = $region41
    $region40: #{tpu_custom_call.1} parent=1 // pred_region
      %128 = vsyncadd [#allocation5], 0
      %s130 = sshll.u32 [#allocation11], 4
      %s131 = int_to_ptr.vmem [resolvable:$true] %s130
      %s132 = sshll.u32 %s5, 4
      %s133 = int_to_ptr.hbm [resolvable:$true] %s132
      %135 = dma.vmem_to_hbm [thread:$0]  %s131, 128, %s133, [#allocation5]
    $region41: #{tpu_custom_call.1} parent=1 // pred_fallthru
      _
    // Predicated region
    $region42: #{tpu_custom_call.1} parent=1 // pred_check
      _
    $region43: #{tpu_custom_call.1} parent=1 // pred_check_branch
      %137 = sbr.rel (0) target = $region45
    $region44: #{tpu_custom_call.1} parent=1 // pred_region
      %139 = dma.done [#allocation5], 128
    $region45: #{tpu_custom_call.1} parent=1 // pred_fallthru
      _
    %140 = vsyncpa [#allocation4], 1
    %141 = vsyncpa [#allocation5], 1
    %142 = vsyncpa [#allocation6], 1
    %143 = vsyncpa [#allocation9], 1

</llo_original>
